<compile_context>
chip_gen: v6e
topology: v6e:2x2x1
jax: 0.10.0
libtpu: 0.0.40
codegen_flags: <defaults>
</compile_context>

<pallas_src>
import jax
import jax.numpy as jnp
from jax import lax
from jax.experimental import pallas as pl
from jax.experimental.pallas import tpu as pltpu


def _gelu_tanh(x):
    # TODO(synk): PyTorch nn.GELU() defaults to the exact erf formulation; we
    # use the tanh approximation (max abs deviation ~1e-3) since erf is not
    # guaranteed to lower in Mosaic.  Reference below uses the same formula.
    c = 0.7978845608028654  # sqrt(2/pi)
    return 0.5 * x * (1.0 + jnp.tanh(c * (x + 0.044715 * x * x * x)))


# ----------------------------------------------------------------------------
# Kernel A: downsample = DyT(channels_first) + Conv2d(kernel=2, stride=2).
# Input is the 2x2-patchified NHWC slab (built from NCHW by ONE XLA transpose
# at stage entry); output is NHWC and feeds the blocks directly.
# ----------------------------------------------------------------------------
def _downsample_kernel(x_ref, alpha_ref, s_tanh_ref, s_lin_ref, shift_ref,
                       w_ref, b_ref, o_ref):
    x = x_ref[0].astype(jnp.float32)                 # (H2, W2, 4*Cin)
    h2, w2, c4 = x.shape

    # DyT (per channel), folded:
    #   y = tanh(alpha*x) * (beta*scale) + x * ((1-beta)*scale) + shift
    y = (jnp.tanh(x * alpha_ref[...]) * s_tanh_ref[...]
         + x * s_lin_ref[...] + shift_ref[...])

    # 2x2/stride-2 conv == (H2*W2, 4Cin) @ (4Cin, Cout); bf16 MXU, f32 acc.
    y2 = y.reshape(h2 * w2, c4).astype(jnp.bfloat16)
    out = jnp.dot(y2, w_ref[...], preferred_element_type=jnp.float32)
    out = out + b_ref[...]
    o_ref[0] = out.reshape(h2, w2, -1).astype(o_ref.dtype)


def downsample_pallas(x_nchw, alpha, beta, scale, shift, conv_w, conv_b):
    B, Cin, H, W = x_nchw.shape
    Cout = conv_w.shape[0]
    H2, W2 = H // 2, W // 2
    C4 = 4 * Cin

    # Single layout pass: NCHW -> 2x2-patchified NHWC:
    #   xp[b, i, j, di*2*Cin + dj*Cin + ci] = x[b, ci, 2i+di, 2j+dj]
    xp = (x_nchw.reshape(B, Cin, H2, 2, W2, 2)
                .transpose(0, 2, 4, 3, 5, 1)
                .reshape(B, H2, W2, C4))

    # Conv weight (Cout, Cin, 2, 2) -> (4*Cin, Cout) in the same patch order.
    w_mat = (jnp.transpose(conv_w, (2, 3, 1, 0))
             .reshape(C4, Cout).astype(jnp.bfloat16))
    b_row = conv_b.reshape(1, Cout).astype(jnp.float32)

    # DyT params: tile per-channel rows over the 4 patch copies, lane-major;
    # scalar alpha/beta are folded into per-channel rows.
    a = alpha.reshape(()).astype(jnp.float32)
    be = beta.reshape(()).astype(jnp.float32)
    scale_t = jnp.tile(scale.astype(jnp.float32), 4)
    alpha_row = jnp.full((1, C4), a, jnp.float32)
    s_tanh = (be * scale_t).reshape(1, C4)
    s_lin = ((1.0 - be) * scale_t).reshape(1, C4)
    shift_row = jnp.tile(shift.astype(jnp.float32), 4).reshape(1, C4)

    flops = int(B * H2 * W2 * (2 * C4 * Cout + 8 * C4))
    bytes_acc = int(B * H2 * W2 * (C4 + Cout) * 4
                    + C4 * Cout * 2 + (4 * C4 + Cout) * 4)
    cost = pl.CostEstimate(flops=flops,
                           transcendentals=int(B * H2 * W2 * C4),
                           bytes_accessed=bytes_acc)

    return pl.pallas_call(
        _downsample_kernel,
        out_shape=jax.ShapeDtypeStruct((B, H2, W2, Cout), x_nchw.dtype),
        grid=(B,),
        in_specs=[
            pl.BlockSpec((1, H2, W2, C4), lambda b: (b, 0, 0, 0)),
            pl.BlockSpec((1, C4), lambda b: (0, 0)),
            pl.BlockSpec((1, C4), lambda b: (0, 0)),
            pl.BlockSpec((1, C4), lambda b: (0, 0)),
            pl.BlockSpec((1, C4), lambda b: (0, 0)),
            pl.BlockSpec((C4, Cout), lambda b: (0, 0)),
            pl.BlockSpec((1, Cout), lambda b: (0, 0)),
        ],
        out_specs=pl.BlockSpec((1, H2, W2, Cout), lambda b: (b, 0, 0, 0)),
        compiler_params=pltpu.CompilerParams(dimension_semantics=("parallel",)),
        cost_estimate=cost,
    )(xp, alpha_row, s_tanh, s_lin, shift_row, w_mat, b_row)


# ----------------------------------------------------------------------------
# Kernel B: one ConvNeXtBlock (dwconv7x7 + DyT + MLP + residual), fused.
# NHWC in / NHWC out; zero padding built in VMEM scratch inside the kernel.
# ----------------------------------------------------------------------------
def _block_kernel(x_ref, dw_ref, dwb_ref, alpha_ref, s_tanh_ref, s_lin_ref,
                  shift_ref, w1_ref, b1_ref, w2_ref, b2_ref, o_ref, xpad_ref):
    _, H, W, C = x_ref.shape
    x = x_ref[0].astype(jnp.float32)                 # (H, W, C); also residual

    # Build the zero-padded slab in VMEM (no jnp.pad / extra HBM pass).
    xpad_ref[...] = jnp.zeros(xpad_ref.shape, jnp.float32)
    xpad_ref[3:3 + H, 3:3 + W, :] = x

    # Depthwise 7x7: 7 sublane (W) shifts, then 7 cheap H-offset slices each.
    acc = jnp.zeros((H, W, C), jnp.float32)
    for kx in range(7):
        xs = xpad_ref[:, kx:kx + W, :]               # (H+6, W, C) one W shift
        for ky in range(7):
            k = ky * 7 + kx
            acc = acc + xs[ky:ky + H] * dw_ref[k:k + 1, :]
    acc = acc + dwb_ref[...]

    # DyT (channels_last), folded: tanh(a*x)*(b*s) + x*((1-b)*s) + shift
    y = (jnp.tanh(acc * alpha_ref[...]) * s_tanh_ref[...]
         + acc * s_lin_ref[...] + shift_ref[...])

    # Pointwise MLP over channels: bf16 operands on the MXU, f32 accumulation.
    y2 = y.reshape(H * W, C).astype(jnp.bfloat16)
    h = jnp.dot(y2, w1_ref[...], preferred_element_type=jnp.float32) + b1_ref[...]
    h = _gelu_tanh(h)
    z = jnp.dot(h.astype(jnp.bfloat16), w2_ref[...],
                preferred_element_type=jnp.float32) + b2_ref[...]
    z = z.reshape(H, W, C)

    # Residual: reuse the already-loaded input tile.
    o_ref[0] = (x + z).astype(o_ref.dtype)


def convnext_block_pallas(x_nhwc, dw_w, dw_b, alpha, beta, scale, shift,
                          w1, b1, w2, b2):
    B, H, W, C = x_nhwc.shape
    C4 = 4 * C

    # Depthwise weights (C, 1, 7, 7) -> (49, C), taps lane-major per channel.
    dw = jnp.transpose(dw_w[:, 0], (1, 2, 0)).reshape(49, C).astype(jnp.float32)
    dwb = dw_b.reshape(1, C).astype(jnp.float32)

    a = alpha.reshape(()).astype(jnp.float32)
    be = beta.reshape(()).astype(jnp.float32)
    sc = scale.astype(jnp.float32)
    alpha_row = jnp.full((1, C), a, jnp.float32)
    s_tanh = (be * sc).reshape(1, C)
    s_lin = ((1.0 - be) * sc).reshape(1, C)
    shift_row = shift.reshape(1, C).astype(jnp.float32)

    w1t = jnp.transpose(w1).astype(jnp.bfloat16)            # (C, 4C)
    b1r = b1.reshape(1, C4).astype(jnp.float32)
    w2t = jnp.transpose(w2).astype(jnp.bfloat16)            # (4C, C)
    b2r = b2.reshape(1, C).astype(jnp.float32)

    hw = H * W
    flops = int(B * hw * (49 * 2 * C + 4 * C * C4 + 10 * C + 8 * C4))
    bytes_acc = int(2 * B * hw * C * 4                      # activations in/out
                    + (49 * C + C + 5 * C) * 4              # dw weights + rows
                    + 2 * C * C4 * 2 + (C4 + C) * 4)        # bf16 MLP weights + biases
    cost = pl.CostEstimate(flops=flops,
                           transcendentals=int(B * hw * (C + C4)),
                           bytes_accessed=bytes_acc)

    return pl.pallas_call(
        _block_kernel,
        out_shape=jax.ShapeDtypeStruct((B, H, W, C), x_nhwc.dtype),
        grid=(B,),
        in_specs=[
            pl.BlockSpec((1, H, W, C), lambda b: (b, 0, 0, 0)),
            pl.BlockSpec((49, C), lambda b: (0, 0)),
            pl.BlockSpec((1, C), lambda b: (0, 0)),
            pl.BlockSpec((1, C), lambda b: (0, 0)),
            pl.BlockSpec((1, C), lambda b: (0, 0)),
            pl.BlockSpec((1, C), lambda b: (0, 0)),
            pl.BlockSpec((1, C), lambda b: (0, 0)),
            pl.BlockSpec((C, C4), lambda b: (0, 0)),
            pl.BlockSpec((1, C4), lambda b: (0, 0)),
            pl.BlockSpec((C4, C), lambda b: (0, 0)),
            pl.BlockSpec((1, C), lambda b: (0, 0)),
        ],
        out_specs=pl.BlockSpec((1, H, W, C), lambda b: (b, 0, 0, 0)),
        scratch_shapes=[pltpu.VMEM((H + 6, W + 6, C), jnp.float32)],
        compiler_params=pltpu.CompilerParams(dimension_semantics=("parallel",)),
        cost_estimate=cost,
    )(x_nhwc, dw, dwb, alpha_row, s_tanh, s_lin, shift_row, w1t, b1r, w2t, b2r)


def convnext_stage_pallas(x, params):
    ds = params.get("downsample")
    if ds is not None:
        # Stage-entry layout pass is fused with the 2x2 patchify.
        y = downsample_pallas(x, ds["alpha"], ds["beta"], ds["scale"],
                              ds["shift"], ds["conv_w"], ds["conv_b"])
    else:
        y = jnp.transpose(x, (0, 2, 3, 1))           # single NCHW->NHWC pass
    for blk in params["blocks"]:
        y = convnext_block_pallas(y, blk["dw_w"], blk["dw_b"], blk["alpha"],
                                  blk["beta"], blk["scale"], blk["shift"],
                                  blk["w1"], blk["b1"], blk["w2"], blk["b2"])
    return jnp.transpose(y, (0, 3, 1, 2))            # single NHWC->NCHW pass


# ----------------------------------------------------------------------------
# Pure-JAX reference (matches the PyTorch module, with the same tanh-GELU).
# ----------------------------------------------------------------------------
def convnext_stage_ref(x, params):
    hp = lax.Precision.HIGHEST
    ds = params.get("downsample")
    if ds is not None:
        a = ds["alpha"].reshape(())
        be = ds["beta"].reshape(())
        y = be * jnp.tanh(a * x) + (1.0 - be) * x
        y = y * ds["scale"][None, :, None, None] + ds["shift"][None, :, None, None]
        x = lax.conv_general_dilated(y, ds["conv_w"], (2, 2), "VALID",
                                     dimension_numbers=("NCHW", "OIHW", "NCHW"),
                                     precision=hp)
        x = x + ds["conv_b"][None, :, None, None]
    for blk in params["blocks"]:
        inp = x
        C = x.shape[1]
        h = lax.conv_general_dilated(x, blk["dw_w"], (1, 1), ((3, 3), (3, 3)),
                                     dimension_numbers=("NCHW", "OIHW", "NCHW"),
                                     feature_group_count=C, precision=hp)
        h = h + blk["dw_b"][None, :, None, None]
        a = blk["alpha"].reshape(())
        be = blk["beta"].reshape(())
        y = be * jnp.tanh(a * h) + (1.0 - be) * h
        y = y * blk["scale"][None, :, None, None] + blk["shift"][None, :, None, None]
        y = jnp.einsum("bchw,oc->bohw", y, blk["w1"], precision=hp)
        y = y + blk["b1"][None, :, None, None]
        y = _gelu_tanh(y)
        y = jnp.einsum("bchw,oc->bohw", y, blk["w2"], precision=hp)
        y = y + blk["b2"][None, :, None, None]
        x = inp + y
    return x


if __name__ == "__main__":
    B, dim_in, dim_out, depth = 2, 4, 8, 2
    H = W = 16

    key = jax.random.PRNGKey(0)
    keys = iter(jax.random.split(key, 64))

    def nrm(shape, s=1.0):
        return jax.random.normal(next(keys), shape, dtype=jnp.float32) * s

    x = nrm((B, dim_in, H, W))

    params = {
        "downsample": {
            "alpha": jnp.array([0.9], jnp.float32),
            "beta": jnp.array([0.55], jnp.float32),
            "scale": 1.0 + 0.1 * nrm((dim_in,)),
            "shift": 0.1 * nrm((dim_in,)),
            "conv_w": nrm((dim_out, dim_in, 2, 2), 0.3),
            "conv_b": nrm((dim_out,), 0.1),
        },
        "blocks": [],
    }
    for _ in range(depth):
        params["blocks"].append({
            "dw_w": nrm((dim_out, 1, 7, 7), 0.1),
            "dw_b": nrm((dim_out,), 0.05),
            "alpha": jnp.array([1.0], jnp.float32),
            "beta": jnp.array([0.5], jnp.float32),
            "scale": 1.0 + 0.1 * nrm((dim_out,)),
            "shift": 0.1 * nrm((dim_out,)),
            "w1": nrm((4 * dim_out, dim_out), 0.2),
            "b1": nrm((4 * dim_out,), 0.05),
            "w2": nrm((dim_out, 4 * dim_out), 0.2),
            "b2": nrm((dim_out,), 0.05),
        })

    out = jax.block_until_ready(convnext_stage_pallas(x, params))
    ref = jax.block_until_ready(convnext_stage_ref(x, params))

    assert out.shape == (B, dim_out, H // 2, W // 2), out.shape
    # Tolerance loosened vs. the pure-f32 version: matmul operands are bf16
    # on the MXU (f32 accumulation), the reference stays f32.
    max_err = float(jnp.max(jnp.abs(out - ref)))
    assert jnp.allclose(out, ref, atol=5e-2, rtol=5e-2), f"mismatch: {max_err}"

    print("KERNEL_OK")
</pallas_src>

<mosaic_0001>
module attributes {stable_mosaic.version = 11 : i64} {
  func.func @_downsample_kernel(%arg0: i32, %arg1: memref<1x8x8x16xf32, #tpu.memory_space<vmem>>, %arg2: memref<1x16xf32, #tpu.memory_space<vmem>>, %arg3: memref<1x16xf32, #tpu.memory_space<vmem>>, %arg4: memref<1x16xf32, #tpu.memory_space<vmem>>, %arg5: memref<1x16xf32, #tpu.memory_space<vmem>>, %arg6: memref<16x8xbf16, #tpu.memory_space<vmem>>, %arg7: memref<1x8xf32, #tpu.memory_space<vmem>>, %arg8: memref<1x8x8x8xf32, #tpu.memory_space<vmem>>) attributes {dimension_semantics = [#tpu.dimension_semantics<parallel>], iteration_bounds = array<i64: 2>, scalar_prefetch = 0 : i64, scratch_operands = 0 : i64, tpu.core_type = #tpu.core_type<tc>, window_params = [{transform_indices = @transform_0, window_bounds = array<i64: 1, 8, 8, 16>}, {pipeline_mode = #tpu.pipeline_mode<synchronous>, transform_indices = @transform_1, window_bounds = array<i64: 1, 16>}, {pipeline_mode = #tpu.pipeline_mode<synchronous>, transform_indices = @transform_2, window_bounds = array<i64: 1, 16>}, {pipeline_mode = #tpu.pipeline_mode<synchronous>, transform_indices = @transform_3, window_bounds = array<i64: 1, 16>}, {pipeline_mode = #tpu.pipeline_mode<synchronous>, transform_indices = @transform_4, window_bounds = array<i64: 1, 16>}, {pipeline_mode = #tpu.pipeline_mode<synchronous>, transform_indices = @transform_5, window_bounds = array<i64: 16, 8>}, {pipeline_mode = #tpu.pipeline_mode<synchronous>, transform_indices = @transform_6, window_bounds = array<i64: 1, 8>}, {transform_indices = @transform_7, window_bounds = array<i64: 1, 8, 8, 8>}]} {
    %c0 = arith.constant 0 : index
    %c0_0 = arith.constant 0 : index
    %c0_1 = arith.constant 0 : index
    %c0_2 = arith.constant 0 : index
    %0 = vector.load %arg1[%c0, %c0_0, %c0_1, %c0_2] : memref<1x8x8x16xf32, #tpu.memory_space<vmem>>, vector<1x8x8x16xf32>
    %1 = vector.shape_cast %0 : vector<1x8x8x16xf32> to vector<8x8x16xf32>
    %c0_3 = arith.constant 0 : index
    %c0_4 = arith.constant 0 : index
    %2 = vector.load %arg2[%c0_3, %c0_4] : memref<1x16xf32, #tpu.memory_space<vmem>>, vector<1x16xf32>
    %3 = vector.shape_cast %2 : vector<1x16xf32> to vector<1x1x16xf32>
    %4 = vector.broadcast %3 : vector<1x1x16xf32> to vector<8x8x16xf32>
    %5 = arith.mulf %1, %4 : vector<8x8x16xf32>
    %6 = math.tanh %5 : vector<8x8x16xf32>
    %c0_5 = arith.constant 0 : index
    %c0_6 = arith.constant 0 : index
    %7 = vector.load %arg3[%c0_5, %c0_6] : memref<1x16xf32, #tpu.memory_space<vmem>>, vector<1x16xf32>
    %8 = vector.shape_cast %7 : vector<1x16xf32> to vector<1x1x16xf32>
    %9 = vector.broadcast %8 : vector<1x1x16xf32> to vector<8x8x16xf32>
    %10 = arith.mulf %6, %9 : vector<8x8x16xf32>
    %c0_7 = arith.constant 0 : index
    %c0_8 = arith.constant 0 : index
    %11 = vector.load %arg4[%c0_7, %c0_8] : memref<1x16xf32, #tpu.memory_space<vmem>>, vector<1x16xf32>
    %12 = vector.shape_cast %11 : vector<1x16xf32> to vector<1x1x16xf32>
    %13 = vector.broadcast %12 : vector<1x1x16xf32> to vector<8x8x16xf32>
    %14 = arith.mulf %1, %13 : vector<8x8x16xf32>
    %15 = arith.addf %10, %14 : vector<8x8x16xf32>
    %c0_9 = arith.constant 0 : index
    %c0_10 = arith.constant 0 : index
    %16 = vector.load %arg5[%c0_9, %c0_10] : memref<1x16xf32, #tpu.memory_space<vmem>>, vector<1x16xf32>
    %17 = vector.shape_cast %16 : vector<1x16xf32> to vector<1x1x16xf32>
    %18 = vector.broadcast %17 : vector<1x1x16xf32> to vector<8x8x16xf32>
    %19 = arith.addf %15, %18 : vector<8x8x16xf32>
    %20 = vector.shape_cast %19 : vector<8x8x16xf32> to vector<64x16xf32>
    %21 = arith.truncf %20 : vector<64x16xf32> to vector<64x16xbf16>
    %c0_11 = arith.constant 0 : index
    %c0_12 = arith.constant 0 : index
    %22 = vector.load %arg6[%c0_11, %c0_12] : memref<16x8xbf16, #tpu.memory_space<vmem>>, vector<16x8xbf16>
    %cst = arith.constant dense<0.000000e+00> : vector<64x8xf32>
    %23 = tpu.matmul %21, %22, %cst {dimension_numbers = #tpu.dot_dimension_numbers<[1], [0], [0], [1], [0, 0, 1, 1], [], []>} : vector<64x16xbf16>, vector<16x8xbf16>, vector<64x8xf32> -> vector<64x8xf32>
    %c0_13 = arith.constant 0 : index
    %c0_14 = arith.constant 0 : index
    %24 = vector.load %arg7[%c0_13, %c0_14] : memref<1x8xf32, #tpu.memory_space<vmem>>, vector<1x8xf32>
    %25 = vector.broadcast %24 : vector<1x8xf32> to vector<64x8xf32>
    %26 = arith.addf %23, %25 : vector<64x8xf32>
    %27 = vector.shape_cast %26 : vector<64x8xf32> to vector<8x8x8xf32>
    %c0_15 = arith.constant 0 : index
    %c0_16 = arith.constant 0 : index
    %c0_17 = arith.constant 0 : index
    %c0_18 = arith.constant 0 : index
    %28 = vector.load %arg8[%c0_15, %c0_16, %c0_17, %c0_18] : memref<1x8x8x8xf32, #tpu.memory_space<vmem>>, vector<1x8x8x8xf32>
    %29 = vector.shape_cast %28 : vector<1x8x8x8xf32> to vector<8x8x8xf32>
    %30 = vector.shape_cast %27 : vector<8x8x8xf32> to vector<1x8x8x8xf32>
    tpu.vector_store %arg8[%c0_15, %c0_16, %c0_17, %c0_18], %30 {strides = array<i32>} : memref<1x8x8x8xf32, #tpu.memory_space<vmem>>, vector<1x8x8x8xf32>,
    return
  }
  func.func @transform_0(%arg0: i32) -> (i32, i32, i32, i32) {
    %c0_i32 = arith.constant 0 : i32
    %c0_i32_0 = arith.constant 0 : i32
    %c0_i32_1 = arith.constant 0 : i32
    %c0_i32_2 = arith.constant 0 : i32
    return %arg0, %c0_i32, %c0_i32_0, %c0_i32_1 : i32, i32, i32, i32
  }
  func.func @transform_1(%arg0: i32) -> (i32, i32) {
    %c0_i32 = arith.constant 0 : i32
    %c0_i32_0 = arith.constant 0 : i32
    %c0_i32_1 = arith.constant 0 : i32
    return %c0_i32, %c0_i32_0 : i32, i32
  }
  func.func @transform_2(%arg0: i32) -> (i32, i32) {
    %c0_i32 = arith.constant 0 : i32
    %c0_i32_0 = arith.constant 0 : i32
    %c0_i32_1 = arith.constant 0 : i32
    return %c0_i32, %c0_i32_0 : i32, i32
  }
  func.func @transform_3(%arg0: i32) -> (i32, i32) {
    %c0_i32 = arith.constant 0 : i32
    %c0_i32_0 = arith.constant 0 : i32
    %c0_i32_1 = arith.constant 0 : i32
    return %c0_i32, %c0_i32_0 : i32, i32
  }
  func.func @transform_4(%arg0: i32) -> (i32, i32) {
    %c0_i32 = arith.constant 0 : i32
    %c0_i32_0 = arith.constant 0 : i32
    %c0_i32_1 = arith.constant 0 : i32
    return %c0_i32, %c0_i32_0 : i32, i32
  }
  func.func @transform_5(%arg0: i32) -> (i32, i32) {
    %c0_i32 = arith.constant 0 : i32
    %c0_i32_0 = arith.constant 0 : i32
    %c0_i32_1 = arith.constant 0 : i32
    return %c0_i32, %c0_i32_0 : i32, i32
  }
  func.func @transform_6(%arg0: i32) -> (i32, i32) {
    %c0_i32 = arith.constant 0 : i32
    %c0_i32_0 = arith.constant 0 : i32
    %c0_i32_1 = arith.constant 0 : i32
    return %c0_i32, %c0_i32_0 : i32, i32
  }
  func.func @transform_7(%arg0: i32) -> (i32, i32, i32, i32) {
    %c0_i32 = arith.constant 0 : i32
    %c0_i32_0 = arith.constant 0 : i32
    %c0_i32_1 = arith.constant 0 : i32
    %c0_i32_2 = arith.constant 0 : i32
    return %arg0, %c0_i32, %c0_i32_0, %c0_i32_1 : i32, i32, i32, i32
  }
}

</mosaic_0001>

<llo_original>
// kernel: tpu_custom_call.1
$region0: #{tpu_custom_call.1}
  #allocation0 [shape = 'u32[]', space=smem, size = 0x4, offset = 0x4, fixed_abs, tag = 'smem constant byte address 0x4 - core index']
  #allocation1 [shape = 'u32[144,128]{1,0:T(1,128)}', space=vmem, size = 0x12000, scoped, tag = 'internal scratch']
  %s0 = inlined_call_operand.hbm [shape: f32[2,8,8,16], index: 0, kind: input, shape index: {}]
  %s1 = inlined_call_operand.vmem [shape: f32[1,16], index: 1, kind: input, shape index: {}]
  %s2 = inlined_call_operand.vmem [shape: f32[1,16], index: 2, kind: input, shape index: {}]
  %s3 = inlined_call_operand.vmem [shape: f32[1,16], index: 3, kind: input, shape index: {}]
  %s4 = inlined_call_operand.vmem [shape: f32[1,16], index: 4, kind: input, shape index: {}]
  %s5 = inlined_call_operand.vmem [shape: bf16[16,8], index: 5, kind: input, shape index: {}]
  %s6 = inlined_call_operand.vmem [shape: f32[1,8], index: 6, kind: input, shape index: {}]
  %s7 = inlined_call_operand.hbm [shape: f32[2,8,8,8], index: 7, kind: output, shape index: {}]
  %s8 = sld [smem:[#allocation0]]
  $region65: #{tpu_custom_call.1} parent=0
    _
  %s10 = ssub.s32 1, %s8
  %s11 = scalar_select 0, %s10, %s8
  $region1: #{tpu_custom_call.1} parent=0
    #allocation2 [shape = 'u8[65536]{0}', space=vmem, size = 0x10000, scoped, tag = 'input window, operand 0']
    #allocation3 [shape = 's32[2]{0}', space=sflag, size = 0x8, scoped, tag = 'scoped memory for tpu_custom_call.1']
    #allocation4 [shape = 's32[2]{0}', space=sflag, size = 0x8, scoped, tag = 'scoped memory for tpu_custom_call.1']
    #allocation5 [shape = 'u8[65536]{0}', space=vmem, size = 0x10000, scoped, tag = 'output window, operand 0']
    %12 = vsyncpa [#allocation3], 0
    %s13 = scalar_lea.sflag [#allocation3], 1
    %14 = vsyncpa %s13, 0
    %15 = vsyncpa [#allocation4], 0
    %s16 = scalar_lea.sflag [#allocation4], 1
    %17 = vsyncpa %s16, 0
    loop: start=0, step=1, limit=4
    $region2: #{tpu_custom_call.1} parent=1 // loop_pre_header
      _
    $region3: #{tpu_custom_call.1} parent=1 // loop_header
      %s19 = sphi 0, %s23
      %p20 = scmp.ge.s32.totalorder %s19, 4
      %s29 = sphi 0, %s31
      %s32 = sphi 0, %s29
      %s33 = sphi 0, %s32
      %s49 = sphi 0, %s33
      %s53 = sphi 0, %s53
      %s55 = sphi 0, %s53
      %s56 = sphi 0, %s55
      %s70 = sphi 0, %s56
      %s74 = sphi 0, %s74
      %s76 = sphi 0, %s74
      %s77 = sphi 0, %s76
      %s91 = sphi 0, %s77
      %s95 = sphi 0, %s95
      %s97 = sphi 0, %s95
      %s98 = sphi 0, %s97
      %s112 = sphi 0, %s98
      %s116 = sphi 0, %s116
      %s118 = sphi 0, %s116
      %s119 = sphi 0, %s118
      %s133 = sphi 0, %s119
      %s137 = sphi 0, %s137
      %s139 = sphi 0, %s137
      %s140 = sphi 0, %s139
      %s154 = sphi 0, %s140
      %s158 = sphi 0, %s158
      %s160 = sphi 0, %s158
      %s161 = sphi 0, %s160
      %s175 = sphi 0, %s161
      %s181 = sphi 0, %s183
      %s184 = sphi 0, %s181
      %s185 = sphi 0, %s184
      %s201 = sphi 0, %s185
    $region4: #{tpu_custom_call.1} parent=1 // loop_header_branch
      %22 = sbr.rel (%p20) target = $region8
    $region5: #{tpu_custom_call.1} parent=1 // loop_body
      %s24 = ssub.s32 %s19, 1
      %s25 = ssub.s32 %s19, 2
      %s26 = sadd.s32 %s19, 1
      %s27 = ssub.s32 %s19, %s26
      %p28 = scmp.eq.s32.totalorder %s27, 0
      %s30 = sadd.s32 %s29, 1
      %s31 = scalar_select %p28, %s29, %s30
      %p34 = pneg %p28
      %p35 = scmp.eq.s32.totalorder %s19, 1
      %p36 = por %p34, %p35
      %p37 = scmp.ne.s32.totalorder %s29, %s32
      %p38 = scmp.eq.s32.totalorder %s19, 0
      %p39 = por %p37, %p38
      %p40 = scmp.ne.s32.totalorder %s29, %s32
      %p41 = scmp.eq.s32.totalorder %s24, 1
      %p42 = por %p40, %p41
      %p43 = scmp.ne.s32.totalorder %s32, %s33
      %p44 = scmp.eq.s32.totalorder %s24, 0
      %p45 = por %p43, %p44
      %p46 = scmp.ne.s32.totalorder %s32, %s33
      %p47 = scmp.eq.s32.totalorder %s25, 1
      %p48 = por %p46, %p47
      %p50 = scmp.ne.s32.totalorder %s33, %s49
      %p51 = scmp.eq.s32.totalorder %s25, 0
      %p52 = por %p50, %p51
      %s54 = sadd.s32 %s53, 1
      %p57 = scmp.eq.s32.totalorder %s19, 1
      %p58 = scmp.ne.s32.totalorder %s53, %s55
      %p59 = scmp.eq.s32.totalorder %s19, 0
      %p60 = por %p58, %p59
      %p61 = scmp.ne.s32.totalorder %s53, %s55
      %p62 = scmp.eq.s32.totalorder %s24, 1
      %p63 = por %p61, %p62
      %p64 = scmp.ne.s32.totalorder %s55, %s56
      %p65 = scmp.eq.s32.totalorder %s24, 0
      %p66 = por %p64, %p65
      %p67 = scmp.ne.s32.totalorder %s55, %s56
      %p68 = scmp.eq.s32.totalorder %s25, 1
      %p69 = por %p67, %p68
      %p71 = scmp.ne.s32.totalorder %s56, %s70
      %p72 = scmp.eq.s32.totalorder %s25, 0
      %p73 = por %p71, %p72
      %s75 = sadd.s32 %s74, 1
      %p78 = scmp.eq.s32.totalorder %s19, 1
      %p79 = scmp.ne.s32.totalorder %s74, %s76
      %p80 = scmp.eq.s32.totalorder %s19, 0
      %p81 = por %p79, %p80
      %p82 = scmp.ne.s32.totalorder %s74, %s76
      %p83 = scmp.eq.s32.totalorder %s24, 1
      %p84 = por %p82, %p83
      %p85 = scmp.ne.s32.totalorder %s76, %s77
      %p86 = scmp.eq.s32.totalorder %s24, 0
      %p87 = por %p85, %p86
      %p88 = scmp.ne.s32.totalorder %s76, %s77
      %p89 = scmp.eq.s32.totalorder %s25, 1
      %p90 = por %p88, %p89
      %p92 = scmp.ne.s32.totalorder %s77, %s91
      %p93 = scmp.eq.s32.totalorder %s25, 0
      %p94 = por %p92, %p93
      %s96 = sadd.s32 %s95, 1
      %p99 = scmp.eq.s32.totalorder %s19, 1
      %p100 = scmp.ne.s32.totalorder %s95, %s97
      %p101 = scmp.eq.s32.totalorder %s19, 0
      %p102 = por %p100, %p101
      %p103 = scmp.ne.s32.totalorder %s95, %s97
      %p104 = scmp.eq.s32.totalorder %s24, 1
      %p105 = por %p103, %p104
      %p106 = scmp.ne.s32.totalorder %s97, %s98
      %p107 = scmp.eq.s32.totalorder %s24, 0
      %p108 = por %p106, %p107
      %p109 = scmp.ne.s32.totalorder %s97, %s98
      %p110 = scmp.eq.s32.totalorder %s25, 1
      %p111 = por %p109, %p110
      %p113 = scmp.ne.s32.totalorder %s98, %s112
      %p114 = scmp.eq.s32.totalorder %s25, 0
      %p115 = por %p113, %p114
      %s117 = sadd.s32 %s116, 1
      %p120 = scmp.eq.s32.totalorder %s19, 1
      %p121 = scmp.ne.s32.totalorder %s116, %s118
      %p122 = scmp.eq.s32.totalorder %s19, 0
      %p123 = por %p121, %p122
      %p124 = scmp.ne.s32.totalorder %s116, %s118
      %p125 = scmp.eq.s32.totalorder %s24, 1
      %p126 = por %p124, %p125
      %p127 = scmp.ne.s32.totalorder %s118, %s119
      %p128 = scmp.eq.s32.totalorder %s24, 0
      %p129 = por %p127, %p128
      %p130 = scmp.ne.s32.totalorder %s118, %s119
      %p131 = scmp.eq.s32.totalorder %s25, 1
      %p132 = por %p130, %p131
      %p134 = scmp.ne.s32.totalorder %s119, %s133
      %p135 = scmp.eq.s32.totalorder %s25, 0
      %p136 = por %p134, %p135
      %s138 = sadd.s32 %s137, 1
      %p141 = scmp.eq.s32.totalorder %s19, 1
      %p142 = scmp.ne.s32.totalorder %s137, %s139
      %p143 = scmp.eq.s32.totalorder %s19, 0
      %p144 = por %p142, %p143
      %p145 = scmp.ne.s32.totalorder %s137, %s139
      %p146 = scmp.eq.s32.totalorder %s24, 1
      %p147 = por %p145, %p146
      %p148 = scmp.ne.s32.totalorder %s139, %s140
      %p149 = scmp.eq.s32.totalorder %s24, 0
      %p150 = por %p148, %p149
      %p151 = scmp.ne.s32.totalorder %s139, %s140
      %p152 = scmp.eq.s32.totalorder %s25, 1
      %p153 = por %p151, %p152
      %p155 = scmp.ne.s32.totalorder %s140, %s154
      %p156 = scmp.eq.s32.totalorder %s25, 0
      %p157 = por %p155, %p156
      %s159 = sadd.s32 %s158, 1
      %p162 = scmp.eq.s32.totalorder %s19, 1
      %p163 = scmp.ne.s32.totalorder %s158, %s160
      %p164 = scmp.eq.s32.totalorder %s19, 0
      %p165 = por %p163, %p164
      %p166 = scmp.ne.s32.totalorder %s158, %s160
      %p167 = scmp.eq.s32.totalorder %s24, 1
      %p168 = por %p166, %p167
      %p169 = scmp.ne.s32.totalorder %s160, %s161
      %p170 = scmp.eq.s32.totalorder %s24, 0
      %p171 = por %p169, %p170
      %p172 = scmp.ne.s32.totalorder %s160, %s161
      %p173 = scmp.eq.s32.totalorder %s25, 1
      %p174 = por %p172, %p173
      %p176 = scmp.ne.s32.totalorder %s161, %s175
      %p177 = scmp.eq.s32.totalorder %s25, 0
      %p178 = por %p176, %p177
      %s179 = ssub.s32 %s19, %s26
      %p180 = scmp.eq.s32.totalorder %s179, 0
      %s182 = sadd.s32 %s181, 1
      %s183 = scalar_select %p180, %s181, %s182
      %p186 = pneg %p180
      %p187 = scmp.eq.s32.totalorder %s19, 1
      %p188 = por %p186, %p187
      %p189 = scmp.ne.s32.totalorder %s181, %s184
      %p190 = scmp.eq.s32.totalorder %s19, 0
      %p191 = por %p189, %p190
      %p192 = scmp.ne.s32.totalorder %s181, %s184
      %p193 = scmp.eq.s32.totalorder %s24, 1
      %p194 = por %p192, %p193
      %p195 = scmp.ne.s32.totalorder %s184, %s185
      %p196 = scmp.eq.s32.totalorder %s24, 0
      %p197 = por %p195, %p196
      %p198 = scmp.ne.s32.totalorder %s184, %s185
      %p199 = scmp.eq.s32.totalorder %s25, 1
      %p200 = por %p198, %p199
      %p202 = scmp.ne.s32.totalorder %s185, %s201
      %p203 = scmp.eq.s32.totalorder %s25, 0
      %p204 = por %p202, %p203
      %p205 = scmp.le.s32.totalorder 1, %s19
      %p206 = scmp.lt.s32.totalorder %s19, 3
      %p207 = pnand %p205, %p206
      %p208 = pneg %p207
      // Predicated region
      $region9: #{tpu_custom_call.1} parent=5 // pred_check
        _
      $region10: #{tpu_custom_call.1} parent=5 // pred_check_branch
        %210 = sbr.rel (%p207) target = $region12
      $region11: #{tpu_custom_call.1} parent=5 // pred_region
        %s211 = ssub.s32 %s19, 1
        // Predicated region
        $region13: #{tpu_custom_call.1} parent=11 // pred_check
          %p212 = pneg %p66
        $region14: #{tpu_custom_call.1} parent=11 // pred_check_branch
          %214 = sbr.rel (%p212) target = $region16
        $region15: #{tpu_custom_call.1} parent=11 // pred_region
          _
        $region16: #{tpu_custom_call.1} parent=11 // pred_fallthru
          _
        // Predicated region
        $region17: #{tpu_custom_call.1} parent=11 // pred_check
          %p215 = pneg %p87
        $region18: #{tpu_custom_call.1} parent=11 // pred_check_branch
          %217 = sbr.rel (%p215) target = $region20
        $region19: #{tpu_custom_call.1} parent=11 // pred_region
          _
        $region20: #{tpu_custom_call.1} parent=11 // pred_fallthru
          _
        // Predicated region
        $region21: #{tpu_custom_call.1} parent=11 // pred_check
          %p218 = pneg %p108
        $region22: #{tpu_custom_call.1} parent=11 // pred_check_branch
          %220 = sbr.rel (%p218) target = $region24
        $region23: #{tpu_custom_call.1} parent=11 // pred_region
          _
        $region24: #{tpu_custom_call.1} parent=11 // pred_fallthru
          _
        // Predicated region
        $region25: #{tpu_custom_call.1} parent=11 // pred_check
          %p221 = pneg %p129
        $region26: #{tpu_custom_call.1} parent=11 // pred_check_branch
          %223 = sbr.rel (%p221) target = $region28
        $region27: #{tpu_custom_call.1} parent=11 // pred_region
          _
        $region28: #{tpu_custom_call.1} parent=11 // pred_fallthru
          _
        // Predicated region
        $region29: #{tpu_custom_call.1} parent=11 // pred_check
          %p224 = pneg %p150
        $region30: #{tpu_custom_call.1} parent=11 // pred_check_branch
          %226 = sbr.rel (%p224) target = $region32
        $region31: #{tpu_custom_call.1} parent=11 // pred_region
          _
        $region32: #{tpu_custom_call.1} parent=11 // pred_fallthru
          _
        // Predicated region
        $region33: #{tpu_custom_call.1} parent=11 // pred_check
          %p227 = pneg %p171
        $region34: #{tpu_custom_call.1} parent=11 // pred_check_branch
          %229 = sbr.rel (%p227) target = $region36
        $region35: #{tpu_custom_call.1} parent=11 // pred_region
          _
        $region36: #{tpu_custom_call.1} parent=11 // pred_fallthru
          _
      $region12: #{tpu_custom_call.1} parent=5 // pred_fallthru
        _
      %p230 = scmp.lt.s32.totalorder %s19, 2
      // Predicated region
      $region37: #{tpu_custom_call.1} parent=5 // pred_check
        %p231 = pneg %p230
      $region38: #{tpu_custom_call.1} parent=5 // pred_check_branch
        %233 = sbr.rel (%p231) target = $region40
      $region39: #{tpu_custom_call.1} parent=5 // pred_region
        // Predicated region
        $region41: #{tpu_custom_call.1} parent=39 // pred_check
          %p234 = pneg %p39
        $region42: #{tpu_custom_call.1} parent=39 // pred_check_branch
          %236 = sbr.rel (%p234) target = $region44
        $region43: #{tpu_custom_call.1} parent=39 // pred_region
          %s237 = sand.u32 %s29, 1
          %s238 = scalar_lea.sflag [#allocation3], %s237
          %s239 = sand.u32 %s29, 1
          %s240 = smul.addr %s239, 64
          %s241 = scalar_lea.vmem [#allocation2], %s240
          %s243 = ssub.s32 1024, 1024
          %244 = vsyncadd %s238, %s243
          %s245 = smul.addr %s19, 8
          %s246 = smul.addr %s245, 128
          %s247 = scalar_lea.hbm %s0, %s246
          %s248 = sshll.u32 %s241, 4
          %s249 = int_to_ptr.vmem [resolvable:$true] %s248
          %254 = dma.hbm_to_vmem [thread:$0]  %s247, 1024, %s249, %s238, 128, 128, 8
        $region44: #{tpu_custom_call.1} parent=39 // pred_fallthru
          _
      $region40: #{tpu_custom_call.1} parent=5 // pred_fallthru
        _
      %p255 = scmp.le.s32.totalorder 1, %s19
      %p256 = scmp.lt.s32.totalorder %s19, 3
      %p257 = pnand %p255, %p256
      %p258 = pneg %p257
      // Predicated region
      $region45: #{tpu_custom_call.1} parent=5 // pred_check
        _
      $region46: #{tpu_custom_call.1} parent=5 // pred_check_branch
        %260 = sbr.rel (%p257) target = $region48
      $region47: #{tpu_custom_call.1} parent=5 // pred_region
        %s261 = ssub.s32 %s19, 1
        %s262 = sand.u32 %s32, 1
        %s263 = scalar_lea.sflag [#allocation3], %s262
        %s264 = sand.u32 %s32, 1
        %s265 = smul.addr %s264, 64
        %s266 = scalar_lea.vmem [#allocation2], %s265
        // Predicated region
        $region49: #{tpu_custom_call.1} parent=47 // pred_check
          %p267 = pneg %p45
        $region50: #{tpu_custom_call.1} parent=47 // pred_check_branch
          %269 = sbr.rel (%p267) target = $region52
        $region51: #{tpu_custom_call.1} parent=47 // pred_region
          %270 = dma.done %s263, 1024
        $region52: #{tpu_custom_call.1} parent=47 // pred_fallthru
          _
        %s271 = sand.u32 %s32, 1
        %s272 = scalar_lea.sflag [#allocation3], %s271
        %s273 = sand.u32 %s32, 1
        %s274 = smul.addr %s273, 64
        %s275 = scalar_lea.vmem [#allocation2], %s274
        %p276 = pneg %p45
        %p277 = pneg %p42
        %p278 = pneg %p66
        %p279 = pneg %p63
        %p280 = pneg %p87
        %p281 = pneg %p84
        %p282 = pneg %p108
        %p283 = pneg %p105
        %p284 = pneg %p129
        %p285 = pneg %p126
        %p286 = pneg %p150
        %p287 = pneg %p147
        %p288 = pneg %p171
        %p289 = pneg %p168
        %p290 = pneg %p197
        %p291 = pneg %p194
        %s292 = sand.u32 %s184, 1
        %s293 = scalar_lea.sflag [#allocation4], %s292
        %s294 = sand.u32 %s184, 1
        %s295 = smul.addr %s294, 64
        %s296 = scalar_lea.vmem [#allocation5], %s295
        %v298 = vld [vmem:[%s266] sm:$0xff]
        %v299 = vld [vmem:[%s266 + $0x8] sm:$0xff]
        %v300 = vld [vmem:[%s266 + $0x10] sm:$0xff]
        %v301 = vld [vmem:[%s266 + $0x18] sm:$0xff]
        %v302 = vld [vmem:[%s266 + $0x20] sm:$0xff]
        %v303 = vld [vmem:[%s266 + $0x28] sm:$0xff]
        %v304 = vld [vmem:[%s266 + $0x30] sm:$0xff]
        %v305 = vld [vmem:[%s266 + $0x38] sm:$0xff]
        %v306 = vld [vmem:[%s1] sm:$0x1]
        %v308 = vlaneseq
        %v309 = vshrl.u32 %v308, 7
        %v310 = vsub.s32 0, %v309
        %v311 = vrot.slane %v306, %v310
        %v313 = vmul.f32 %v298, %v311
        %v314 = vmul.f32 %v299, %v311
        %v315 = vmul.f32 %v300, %v311
        %v316 = vmul.f32 %v301, %v311
        %v317 = vmul.f32 %v302, %v311
        %v318 = vmul.f32 %v303, %v311
        %v319 = vmul.f32 %v304, %v311
        %v320 = vmul.f32 %v305, %v311
        %v321 = vtanh.pop %v313
        %v322 = vtanh.pop %v314
        %v323 = vtanh.pop %v315
        %v324 = vtanh.pop %v316
        %v325 = vtanh.pop %v317
        %v326 = vtanh.pop %v318
        %v327 = vtanh.pop %v319
        %v328 = vtanh.pop %v320
        %v329 = vld [vmem:[%s2] sm:$0x1]
        %v331 = vlaneseq
        %v332 = vshrl.u32 %v331, 7
        %v333 = vsub.s32 0, %v332
        %v334 = vrot.slane %v329, %v333
        %v336 = vmul.f32 %v321, %v334
        %v337 = vmul.f32 %v322, %v334
        %v338 = vmul.f32 %v323, %v334
        %v339 = vmul.f32 %v324, %v334
        %v340 = vmul.f32 %v325, %v334
        %v341 = vmul.f32 %v326, %v334
        %v342 = vmul.f32 %v327, %v334
        %v343 = vmul.f32 %v328, %v334
        %v344 = vld [vmem:[%s3] sm:$0x1]
        %v346 = vlaneseq
        %v347 = vshrl.u32 %v346, 7
        %v348 = vsub.s32 0, %v347
        %v349 = vrot.slane %v344, %v348
        %v351 = vmul.f32 %v298, %v349
        %v352 = vmul.f32 %v299, %v349
        %v353 = vmul.f32 %v300, %v349
        %v354 = vmul.f32 %v301, %v349
        %v355 = vmul.f32 %v302, %v349
        %v356 = vmul.f32 %v303, %v349
        %v357 = vmul.f32 %v304, %v349
        %v358 = vmul.f32 %v305, %v349
        %v359 = vadd.f32 %v336, %v351
        %v360 = vadd.f32 %v337, %v352
        %v361 = vadd.f32 %v338, %v353
        %v362 = vadd.f32 %v339, %v354
        %v363 = vadd.f32 %v340, %v355
        %v364 = vadd.f32 %v341, %v356
        %v365 = vadd.f32 %v342, %v357
        %v366 = vadd.f32 %v343, %v358
        %v367 = vld [vmem:[%s4] sm:$0x1]
        %v369 = vlaneseq
        %v370 = vshrl.u32 %v369, 7
        %v371 = vsub.s32 0, %v370
        %v372 = vrot.slane %v367, %v371
        %v374 = vadd.f32 %v359, %v372
        %v375 = vadd.f32 %v360, %v372
        %v376 = vadd.f32 %v361, %v372
        %v377 = vadd.f32 %v362, %v372
        %v378 = vadd.f32 %v363, %v372
        %v379 = vadd.f32 %v364, %v372
        %v380 = vadd.f32 %v365, %v372
        %v381 = vadd.f32 %v366, %v372
        %v382 = vpack.c.bf16 %v375, %v374
        %v383 = vpack.c.bf16 %v377, %v376
        %v384 = vpack.c.bf16 %v379, %v378
        %v385 = vpack.c.bf16 %v381, %v380
        %v386 = vld [vmem:[%s5] sm:$0xf]
        %v387 = vld [vmem:[%s5 + $0x4] sm:$0xf]
        %v388 = vld [vmem:[%s6] sm:$0x1]
        %v390 = vlaneseq
        %v391 = vshrl.u32 %v390, 7
        %v392 = vsub.s32 0, %v391
        %v393 = vrot.slane %v388, %v392
        %v397 = vunpack.c.l.b16 %v386
        %v398 = vunpack.c.l.b16 %v387
        %v399 = vpack.c.b16 %v398, %v397
        %vm401 = vcmask 130048
        %v403 = vsel %vm401, %v382, 0
        %v406 = vsel %vm401, %v383, 0
        %v409 = vsel %vm401, %v384, 0
        %v412 = vsel %vm401, %v385, 0
        %414 = vmatprep.subr.bf16.mxu0 0
        %415 = vmatpush1.bf16.msra.mxu0 0
        %416 = vmatprep.subr.bf16.mxu0 0
        %417 = vmatpush1.bf16.msra.mxu0 0
        %418 = vmatprep.subr.bf16.mxu0 0
        %419 = vmatpush1.bf16.msra.mxu0 0
        %420 = vmatprep.subr.bf16.mxu0 0
        %421 = vmatpush1.bf16.msra.mxu0 0
        %422 = vmatprep.subr.bf16.mxu0 0
        %423 = vmatpush1.bf16.msra.mxu0 0
        %424 = vmatprep.subr.bf16.mxu0 0
        %425 = vmatpush1.bf16.msra.mxu0 0
        %426 = vmatprep.subr.bf16.mxu0 0
        %427 = vmatpush1.bf16.msra.mxu0 0
        %428 = vmatprep.subr.bf16.mxu0 0
        %429 = vmatpush1.bf16.msra.mxu0 %v399
        %430 = vmatprep.subr.bf16.mxu0 0
        %431 = vmatpush2.bf16.msra.mxu0 0
        %432 = vmatprep.subr.bf16.mxu0 0
        %433 = vmatpush2.bf16.msra.mxu0 0
        %434 = vmatprep.subr.bf16.mxu0 0
        %435 = vmatpush2.bf16.msra.mxu0 0
        %436 = vmatprep.subr.bf16.mxu0 0
        %437 = vmatpush2.bf16.msra.mxu0 0
        %438 = vmatprep.subr.bf16.mxu0 0
        %439 = vmatpush2.bf16.msra.mxu0 0
        %440 = vmatprep.subr.bf16.mxu0 0
        %441 = vmatpush2.bf16.msra.mxu0 0
        %442 = vmatprep.subr.bf16.mxu0 0
        %443 = vmatpush2.bf16.msra.mxu0 0
        %444 = vmatprep.subr.bf16.mxu0 0
        %445 = vmatpush2.bf16.msra.mxu0 0
        %446 = vmatprep.mubr.bf16.mxu0 0
        %447 = vmatmul.mubr.bf16.gmra.mxu0 %v403
        %v448 = vpop.f32.mrf.mxu0
        %v449 = vadd.f32 %v393, %v448
        %v450 = vpop.f32.mrf.mxu0
        %v451 = vpop.f32.mrf.mxu0
        %v452 = vadd.f32 %v393, %v451
        %v453 = vpop.f32.mrf.mxu0
        %454 = vmatprep.mubr.bf16.mxu0 0
        %455 = vmatmul.mubr.bf16.gmra.mxu0 %v406
        %v456 = vpop.f32.mrf.mxu0
        %v457 = vadd.f32 %v393, %v456
        %v458 = vpop.f32.mrf.mxu0
        %v459 = vpop.f32.mrf.mxu0
        %v460 = vadd.f32 %v393, %v459
        %v461 = vpop.f32.mrf.mxu0
        %462 = vmatprep.mubr.bf16.mxu0 0
        %463 = vmatmul.mubr.bf16.gmra.mxu0 %v409
        %v464 = vpop.f32.mrf.mxu0
        %v465 = vadd.f32 %v393, %v464
        %v466 = vpop.f32.mrf.mxu0
        %v467 = vpop.f32.mrf.mxu0
        %v468 = vadd.f32 %v393, %v467
        %v469 = vpop.f32.mrf.mxu0
        %470 = vmatprep.mubr.bf16.mxu0 0
        %471 = vmatmul.mubr.bf16.gmra.mxu0 %v412
        %v472 = vpop.f32.mrf.mxu0
        %v473 = vadd.f32 %v393, %v472
        %v474 = vpop.f32.mrf.mxu0
        %v475 = vpop.f32.mrf.mxu0
        %v476 = vadd.f32 %v393, %v475
        %v477 = vpop.f32.mrf.mxu0
        %478 = vdwg.mxu0
        %vm479 = vcmask 64512
        %480 = vst.msk [vmem:[%s296] sm:$0xff] %vm479, %v449
        %481 = vst.msk [vmem:[%s296 + $0x8] sm:$0xff] %vm479, %v452
        %482 = vst.msk [vmem:[%s296 + $0x10] sm:$0xff] %vm479, %v457
        %483 = vst.msk [vmem:[%s296 + $0x18] sm:$0xff] %vm479, %v460
        %484 = vst.msk [vmem:[%s296 + $0x20] sm:$0xff] %vm479, %v465
        %485 = vst.msk [vmem:[%s296 + $0x28] sm:$0xff] %vm479, %v468
        %486 = vst.msk [vmem:[%s296 + $0x30] sm:$0xff] %vm479, %v473
        %487 = vst.msk [vmem:[%s296 + $0x38] sm:$0xff] %vm479, %v476
        %s488 = sand.u32 %s184, 1
        %s489 = scalar_lea.sflag [#allocation4], %s488
        %s490 = sand.u32 %s184, 1
        %s491 = smul.addr %s490, 64
        %s492 = scalar_lea.vmem [#allocation5], %s491
        // Predicated region
        $region53: #{tpu_custom_call.1} parent=47 // pred_check
          %p493 = pneg %p194
        $region54: #{tpu_custom_call.1} parent=47 // pred_check_branch
          %495 = sbr.rel (%p493) target = $region56
        $region55: #{tpu_custom_call.1} parent=47 // pred_region
          %s497 = ssub.s32 1024, 1024
          %498 = vsyncadd %s489, %s497
          %s499 = smul.addr %s24, 8
          %s500 = smul.addr %s499, 128
          %s501 = scalar_lea.hbm %s7, %s500
          %s502 = sshll.u32 %s492, 4
          %s503 = int_to_ptr.vmem [resolvable:$true] %s502
          %508 = dma.vmem_to_hbm [thread:$0]  %s503, 1024, %s501, %s489, 128, 128, 8
        $region56: #{tpu_custom_call.1} parent=47 // pred_fallthru
          _
      $region48: #{tpu_custom_call.1} parent=5 // pred_fallthru
        _
      %p509 = scmp.le.s32.totalorder 2, %s19
      // Predicated region
      $region57: #{tpu_custom_call.1} parent=5 // pred_check
        %p510 = pneg %p509
      $region58: #{tpu_custom_call.1} parent=5 // pred_check_branch
        %512 = sbr.rel (%p510) target = $region60
      $region59: #{tpu_custom_call.1} parent=5 // pred_region
        %s513 = ssub.s32 %s19, 2
        // Predicated region
        $region61: #{tpu_custom_call.1} parent=59 // pred_check
          %p514 = pneg %p200
        $region62: #{tpu_custom_call.1} parent=59 // pred_check_branch
          %516 = sbr.rel (%p514) target = $region64
        $region63: #{tpu_custom_call.1} parent=59 // pred_region
          %s517 = sand.u32 %s185, 1
          %s518 = scalar_lea.sflag [#allocation4], %s517
          %s519 = sand.u32 %s185, 1
          %s520 = smul.addr %s519, 64
          %s521 = scalar_lea.vmem [#allocation5], %s520
          %522 = dma.done %s518, 1024
        $region64: #{tpu_custom_call.1} parent=59 // pred_fallthru
          _
      $region60: #{tpu_custom_call.1} parent=5 // pred_fallthru
        _
    $region6: #{tpu_custom_call.1} parent=1 // loop_footer
      %s23 = sadd.s32 1, %s19
    $region7: #{tpu_custom_call.1} parent=1 // loop_footer_branch
      %18 = sbr.rel target = $region3
    $region8: #{tpu_custom_call.1} parent=1 // loop_exit
      _
    %523 = vsyncpa [#allocation3], 1
    %s524 = scalar_lea.sflag [#allocation3], 1
    %525 = vsyncpa %s524, 1
    %526 = vsyncpa [#allocation4], 1
    %s527 = scalar_lea.sflag [#allocation4], 1
    %528 = vsyncpa %s527, 1

</llo_original>
